<compile_context>
chip_gen: v7x
topology: tpu7x:2x2x1
jax: 0.10.0
libtpu: 0.0.40
codegen_flags: <defaults>
</compile_context>

<pallas_src>
from functools import partial

import jax
import jax.numpy as jnp
from jax.experimental import pallas as pl
from jax.experimental.pallas import tpu as pltpu


_VMEM_BUDGET_BYTES = 44 * (1 << 20)   # keep the working set under v7x's 64 MiB physical
_VMEM_LIMIT_CAP = 64 * (1 << 20)      # cap for vmem_limit_bytes (portable across chips)


def _round_up(x, m):
    return ((x + m - 1) // m) * m


def _est_vmem_bytes(tb, k_pad, vdim, num_hid):
    """Rough per-step VMEM accounting for a given tile configuration."""
    v_tile = tb * k_pad * vdim * 4 * 2          # f32 v block, double-buffered
    v_cast = tb * k_pad * vdim * 2              # in-kernel bf16 copy of the v tile
    h_f32 = tb * k_pad * num_hid * 4            # first-layer activations (f32)
    qb_tile = tb * num_hid * 4 * 2              # hoisted q projection, double-buffered
    out_tile = tb * k_pad * 4 * 2               # output block, double-buffered
    weights = vdim * num_hid * 2 + num_hid * 4  # single-buffered bf16 W1_v + f32 w2
    return v_tile + v_cast + h_f32 + qb_tile + out_tile + weights


def _attention_kernel(vf_ref, qb_ref, w1v_ref, w2_ref, out_ref, *, k_valid):
    tb, k_pad = out_ref.shape
    num_hid = qb_ref.shape[-1]

    # Main GEMM on the MXU.  The streamed v tile stays f32 in HBM (no wrapper-side
    # cast/pad pass) and is cast to bf16 in-register here, so the MXU runs at bf16
    # rate; w1_v arrives already bf16; accumulation is f32.
    h = jnp.dot(vf_ref[...].astype(jnp.bfloat16), w1v_ref[...],
                preferred_element_type=jnp.float32)

    # Fold in the hoisted per-batch q projection (+ first-layer bias), then ReLU.
    # k_pad is a multiple of 8 so this reshape splits the sublane dim on tile
    # boundaries (no relayout).
    h = h.reshape(tb, k_pad, num_hid) + qb_ref[...][:, None, :]
    h = jnp.maximum(h, 0.0)

    # Second layer is N=1: VPU multiply + lane reduce instead of an MXU pass.
    logits = jnp.sum(h * w2_ref[...][None, :, :], axis=-1)          # (tb, k_pad)

    # Mask padded object slots (compile-time branch; skipped when K % 8 == 0).
    if k_valid < k_pad:
        lane = jax.lax.broadcasted_iota(jnp.int32, (tb, k_pad), 1)
        logits = jnp.where(lane < k_valid, logits, -jnp.inf)

    # Softmax over the K (lane) axis.
    m = jnp.max(logits, axis=-1, keepdims=True)
    e = jnp.exp(logits - m)
    s = jnp.sum(e, axis=-1, keepdims=True)
    out_ref[...] = (e * pl.reciprocal(s)).astype(out_ref.dtype)


def attention_forward(v, q, w1, b1, w2, b2, *, block_rows=1024):
    """v: [B, K, vdim] f32, q: [B, qdim] f32.
    w1: [num_hid, vdim+qdim] (PyTorch Linear layout), b1: [num_hid]
    w2: [1, num_hid], b2: [1]
    Returns softmax attention weights [B, K, 1]."""
    B, K, vdim = v.shape
    num_hid = w1.shape[0]

    # cat(v, q) @ W1^T == v @ W1_v^T + q @ W1_q^T.  The q term is per-batch only,
    # so compute it (plus b1) once outside the kernel as a (B, num_hid) bias row.
    w1_v = jnp.transpose(w1[:, :vdim]).astype(jnp.bfloat16)          # (vdim, num_hid)
    qb = jnp.dot(q, jnp.transpose(w1[:, vdim:]),
                 precision=jax.lax.Precision.HIGHEST) + b1[None, :]  # (B, num_hid)
    qb = qb.astype(jnp.float32)
    w2_row = w2.reshape(1, num_hid).astype(jnp.float32)
    del b2  # scalar logit offset cancels under softmax

    # Pad only K (sublane tile) when needed; never materialize a batch-padded copy
    # of v in HBM.  Partial last batch blocks are handled by Pallas; their rows
    # contain undefined data, stay per-row, and are sliced off below.
    k_pad = _round_up(K, 8)
    v_in = v
    if k_pad != K:
        v_in = jnp.pad(v, ((0, 0), (0, k_pad - K), (0, 0)))  # single unavoidable pad
    v_flat = v_in.reshape(B * k_pad, vdim)                    # contiguous -> free

    # Batch block TB: target ~block_rows MXU rows per step, clamp by the VMEM
    # budget (not just block_rows), keep TB a multiple of 8 (or the whole batch).
    tb = max(1, block_rows // k_pad)
    while tb > 8 and _est_vmem_bytes(tb, k_pad, vdim, num_hid) > _VMEM_BUDGET_BYTES:
        tb -= 8
    if tb >= B:
        tb = B
        if B >= 16:
            # v7x megacore: a 1-step "parallel" grid would idle one TensorCore.
            tb = _round_up(pl.cdiv(B, 2), 8)
    else:
        tb = min(B, max(8, (tb // 8) * 8))
    # TODO(synk): tile the K (object) axis too if even tb == 8 exceeds the VMEM
    # budget at extreme (K, vdim) configurations.

    b_pad = _round_up(B, tb)
    grid = (b_pad // tb,)

    vmem_limit = int(min(_VMEM_LIMIT_CAP,
                         max(2 * _est_vmem_bytes(tb, k_pad, vdim, num_hid),
                             32 * (1 << 20))))

    grid_spec = pltpu.PrefetchScalarGridSpec(
        num_scalar_prefetch=0,
        grid=grid,
        in_specs=[
            pl.BlockSpec((tb * k_pad, vdim), lambda i: (i, 0)),
            pl.BlockSpec((tb, num_hid), lambda i: (i, 0)),
            # Grid-invariant weights: single-buffered (no re-DMA, half the VMEM).
            pl.BlockSpec((vdim, num_hid), lambda i: (0, 0),
                         pipeline_mode=pl.Buffered(1)),
            pl.BlockSpec((1, num_hid), lambda i: (0, 0),
                         pipeline_mode=pl.Buffered(1)),
        ],
        out_specs=pl.BlockSpec((tb, k_pad), lambda i: (i, 0)),
    )

    out = pl.pallas_call(
        partial(_attention_kernel, k_valid=K),
        out_shape=jax.ShapeDtypeStruct((b_pad, k_pad), jnp.float32),
        grid_spec=grid_spec,
        compiler_params=pltpu.CompilerParams(
            dimension_semantics=("parallel",),
            vmem_limit_bytes=vmem_limit),
    )(v_flat, qb, w1_v, w2_row)

    return out[:B, :K].reshape(B, K, 1)


def _weight_norm_effective(v_weight, g):
    # PyTorch weight_norm(dim=None): w = g * v / ||v||_F (scalar g).
    return g * v_weight / jnp.sqrt(jnp.sum(v_weight * v_weight))


def _reference(v, q, w1, b1, w2, b2):
    B, K, _ = v.shape
    q_rep = jnp.broadcast_to(q[:, None, :], (B, K, q.shape[1]))
    vq = jnp.concatenate([v, q_rep], axis=2)
    joint = jnp.maximum(
        jnp.einsum("bkd,hd->bkh", vq, w1,
                   precision=jax.lax.Precision.HIGHEST) + b1, 0.0)
    logits = jnp.einsum("bkh,oh->bko", joint, w2,
                        precision=jax.lax.Precision.HIGHEST) + b2
    return jax.nn.softmax(logits, axis=1)


if __name__ == "__main__":
    # Small, deterministic example shapes.
    B, K, VDIM, QDIM, NUM_HID = 2, 8, 16, 32, 32

    key = jax.random.PRNGKey(0)
    kv, kq, kw1, kb1, kw2, kb2 = jax.random.split(key, 6)

    v = jax.random.normal(kv, (B, K, VDIM), dtype=jnp.float32)
    q = jax.random.normal(kq, (B, QDIM), dtype=jnp.float32)

    # Deterministic parameter init (synthetic). weight_norm is a
    # reparameterization; we build the effective weights explicitly.
    w1_dir = jax.random.normal(kw1, (NUM_HID, VDIM + QDIM), jnp.float32) * 0.1
    g1 = jnp.float32(1.3)
    w1 = _weight_norm_effective(w1_dir, g1)
    b1 = jax.random.normal(kb1, (NUM_HID,), jnp.float32) * 0.1

    w2_dir = jax.random.normal(kw2, (1, NUM_HID), jnp.float32) * 0.1
    g2 = jnp.float32(0.7)
    w2 = _weight_norm_effective(w2_dir, g2)
    b2 = jax.random.normal(kb2, (1,), jnp.float32) * 0.1

    out = attention_forward(v, q, w1, b1, w2, b2)
    out = jax.block_until_ready(out)

    ref = _reference(v, q, w1, b1, w2, b2)
    assert out.shape == (B, K, 1)
    # Tolerance relaxed vs the pure-f32 reference: the first-layer GEMM now runs
    # with bf16 MXU operands (f32 accumulation), per the performance review.
    assert jnp.allclose(out, ref, atol=1e-2, rtol=1e-2), "mismatch vs reference"
    # Attention weights along K must sum to 1 (exact softmax property in f32).
    assert jnp.allclose(jnp.sum(out, axis=1), 1.0, atol=1e-5)

    print("KERNEL_OK")
</pallas_src>

<mosaic_0001>
module attributes {stable_mosaic.version = 11 : i64} {
  func.func @_attention_kernel(%arg0: i32, %arg1: memref<16x16xf32, #tpu.memory_space<vmem>>, %arg2: memref<2x32xf32, #tpu.memory_space<vmem>>, %arg3: memref<16x32xbf16, #tpu.memory_space<vmem>>, %arg4: memref<1x32xf32, #tpu.memory_space<vmem>>, %arg5: memref<2x8xf32, #tpu.memory_space<vmem>>) attributes {dimension_semantics = [#tpu.dimension_semantics<parallel>], iteration_bounds = array<i64: 1>, scalar_prefetch = 0 : i64, scratch_operands = 0 : i64, tpu.core_type = #tpu.core_type<tc>, window_params = [{transform_indices = @transform_0, window_bounds = array<i64: 16, 16>}, {transform_indices = @transform_1, window_bounds = array<i64: 2, 32>}, {pipeline_mode = #tpu.pipeline_mode<synchronous>, transform_indices = @transform_2, window_bounds = array<i64: 16, 32>}, {pipeline_mode = #tpu.pipeline_mode<synchronous>, transform_indices = @transform_3, window_bounds = array<i64: 1, 32>}, {transform_indices = @transform_4, window_bounds = array<i64: 2, 8>}]} {
    %c0 = arith.constant 0 : index
    %c0_0 = arith.constant 0 : index
    %0 = vector.load %arg1[%c0, %c0_0] : memref<16x16xf32, #tpu.memory_space<vmem>>, vector<16x16xf32>
    %1 = arith.truncf %0 : vector<16x16xf32> to vector<16x16xbf16>
    %c0_1 = arith.constant 0 : index
    %c0_2 = arith.constant 0 : index
    %2 = vector.load %arg3[%c0_1, %c0_2] : memref<16x32xbf16, #tpu.memory_space<vmem>>, vector<16x32xbf16>
    %cst = arith.constant dense<0.000000e+00> : vector<16x32xf32>
    %3 = tpu.matmul %1, %2, %cst {dimension_numbers = #tpu.dot_dimension_numbers<[1], [0], [0], [1], [0, 0, 1, 1], [], []>} : vector<16x16xbf16>, vector<16x32xbf16>, vector<16x32xf32> -> vector<16x32xf32>
    %4 = vector.shape_cast %3 : vector<16x32xf32> to vector<2x8x32xf32>
    %c0_3 = arith.constant 0 : index
    %c0_4 = arith.constant 0 : index
    %5 = vector.load %arg2[%c0_3, %c0_4] : memref<2x32xf32, #tpu.memory_space<vmem>>, vector<2x32xf32>
    %6 = vector.shape_cast %5 : vector<2x32xf32> to vector<2x1x32xf32>
    %7 = vector.broadcast %6 : vector<2x1x32xf32> to vector<2x8x32xf32>
    %8 = arith.addf %4, %7 : vector<2x8x32xf32>
    %cst_5 = arith.constant 0.000000e+00 : f32
    %9 = vector.broadcast %cst_5 : f32 to vector<2x8x32xf32>
    %10 = arith.maximumf %8, %9 : vector<2x8x32xf32>
    %c0_6 = arith.constant 0 : index
    %c0_7 = arith.constant 0 : index
    %11 = vector.load %arg4[%c0_6, %c0_7] : memref<1x32xf32, #tpu.memory_space<vmem>>, vector<1x32xf32>
    %12 = vector.shape_cast %11 : vector<1x32xf32> to vector<1x1x32xf32>
    %13 = vector.broadcast %12 : vector<1x1x32xf32> to vector<2x8x32xf32>
    %14 = arith.mulf %10, %13 : vector<2x8x32xf32>
    %cst_8 = arith.constant dense<0.000000e+00> : vector<2x8xf32>
    %15 = vector.multi_reduction <add>, %14, %cst_8 [2] : vector<2x8x32xf32> to vector<2x8xf32>
    %cst_9 = arith.constant dense<0xFF800000> : vector<2xf32>
    %16 = vector.multi_reduction <maximumf>, %15, %cst_9 [1] : vector<2x8xf32> to vector<2xf32>
    %17 = vector.shape_cast %16 : vector<2xf32> to vector<2x1xf32>
    %18 = vector.broadcast %17 : vector<2x1xf32> to vector<2x8xf32>
    %19 = arith.subf %15, %18 : vector<2x8xf32>
    %20 = math.exp %19 : vector<2x8xf32>
    %cst_10 = arith.constant dense<0.000000e+00> : vector<2xf32>
    %21 = vector.multi_reduction <add>, %20, %cst_10 [1] : vector<2x8xf32> to vector<2xf32>
    %22 = vector.shape_cast %21 : vector<2xf32> to vector<2x1xf32>
    %23 = tpu.reciprocal %22 : vector<2x1xf32> -> vector<2x1xf32>
    %24 = vector.broadcast %23 : vector<2x1xf32> to vector<2x8xf32>
    %25 = arith.mulf %20, %24 : vector<2x8xf32>
    %c0_11 = arith.constant 0 : index
    %c0_12 = arith.constant 0 : index
    %26 = vector.load %arg5[%c0_11, %c0_12] : memref<2x8xf32, #tpu.memory_space<vmem>>, vector<2x8xf32>
    tpu.vector_store %arg5[%c0_11, %c0_12], %25 {strides = array<i32>} : memref<2x8xf32, #tpu.memory_space<vmem>>, vector<2x8xf32>,
    return
  }
  func.func @transform_0(%arg0: i32) -> (i32, i32) {
    %c0_i32 = arith.constant 0 : i32
    %c0_i32_0 = arith.constant 0 : i32
    return %arg0, %c0_i32 : i32, i32
  }
  func.func @transform_1(%arg0: i32) -> (i32, i32) {
    %c0_i32 = arith.constant 0 : i32
    %c0_i32_0 = arith.constant 0 : i32
    return %arg0, %c0_i32 : i32, i32
  }
  func.func @transform_2(%arg0: i32) -> (i32, i32) {
    %c0_i32 = arith.constant 0 : i32
    %c0_i32_0 = arith.constant 0 : i32
    %c0_i32_1 = arith.constant 0 : i32
    return %c0_i32, %c0_i32_0 : i32, i32
  }
  func.func @transform_3(%arg0: i32) -> (i32, i32) {
    %c0_i32 = arith.constant 0 : i32
    %c0_i32_0 = arith.constant 0 : i32
    %c0_i32_1 = arith.constant 0 : i32
    return %c0_i32, %c0_i32_0 : i32, i32
  }
  func.func @transform_4(%arg0: i32) -> (i32, i32) {
    %c0_i32 = arith.constant 0 : i32
    %c0_i32_0 = arith.constant 0 : i32
    return %arg0, %c0_i32 : i32, i32
  }
}

</mosaic_0001>

<llo_original>
// kernel: tpu_custom_call.1
$region0: #{tpu_custom_call.1}
  #allocation0 [shape = 'u32[]', space=smem, size = 0x4, offset = 0x4, fixed_abs, tag = 'smem constant byte address 0x4 - core index']
  #allocation1 [shape = 'u32[144,128]{1,0:T(1,128)}', space=vmem, size = 0x12000, scoped, tag = 'internal scratch']
  %s0 = inlined_call_operand.hbm [shape: f32[16,16], index: 0, kind: input, shape index: {}]
  %s1 = inlined_call_operand.vmem [shape: f32[2,32], index: 1, kind: input, shape index: {}]
  %s2 = inlined_call_operand.hbm [shape: bf16[16,32], index: 2, kind: input, shape index: {}]
  %s3 = inlined_call_operand.vmem [shape: f32[1,32], index: 3, kind: input, shape index: {}]
  %s4 = inlined_call_operand.hbm [shape: f32[2,8], index: 4, kind: output, shape index: {}]
  %s5 = sld [smem:[#allocation0]]
  $region34: #{tpu_custom_call.1} parent=0
    _
  %s7 = ssub.s32 1, %s5
  %s8 = scalar_select 0, %s7, %s5
  $region1: #{tpu_custom_call.1} parent=0
    #allocation2 [shape = 'u8[8192]{0}', space=vmem, size = 0x2000, scoped, tag = 'input window, operand 0, single buffered']
    #allocation3 [shape = 's32[1]{0}', space=sflag, size = 0x4, scoped, tag = 'scoped memory for tpu_custom_call.1']
    #allocation4 [shape = 's32[1]{0}', space=sflag, size = 0x4, scoped, tag = 'scoped memory for tpu_custom_call.1']
    #allocation5 [shape = 'u8[4096]{0}', space=vmem, size = 0x1000, scoped, tag = 'input window, operand 2, single buffered']
    #allocation6 [shape = 's32[1]{0}', space=sflag, size = 0x4, scoped, tag = 'scoped memory for tpu_custom_call.1']
    #allocation7 [shape = 'u8[1024]{0}', space=vmem, size = 0x400, scoped, tag = 'output window, operand 0, single buffered']
    %9 = vsyncpa [#allocation3], 0
    %10 = vsyncpa [#allocation6], 0
    %11 = vsyncpa [#allocation4], 0
    // Predicated region
    $region2: #{tpu_custom_call.1} parent=1 // pred_check
      _
    $region3: #{tpu_custom_call.1} parent=1 // pred_check_branch
      %13 = sbr.rel (0) target = $region5
    $region4: #{tpu_custom_call.1} parent=1 // pred_region
      %s15 = ssub.s32 256, 256
      %16 = vsyncadd [#allocation3], %s15
      %s17 = sshll.u32 [#allocation2], 4
      %s18 = int_to_ptr.vmem [resolvable:$true] %s17
      %23 = dma.hbm_to_vmem [thread:$0]  %s0, 256, %s18, [#allocation3], 128, 128, 8
    $region5: #{tpu_custom_call.1} parent=1 // pred_fallthru
      _
    // Predicated region
    $region6: #{tpu_custom_call.1} parent=1 // pred_check
      _
    $region7: #{tpu_custom_call.1} parent=1 // pred_check_branch
      %25 = sbr.rel (0) target = $region9
    $region8: #{tpu_custom_call.1} parent=1 // pred_region
      _
    $region9: #{tpu_custom_call.1} parent=1 // pred_fallthru
      _
    // Predicated region
    $region10: #{tpu_custom_call.1} parent=1 // pred_check
      _
    $region11: #{tpu_custom_call.1} parent=1 // pred_check_branch
      %27 = sbr.rel (0) target = $region13
    $region12: #{tpu_custom_call.1} parent=1 // pred_region
      %s29 = ssub.s32 128, 128
      %30 = vsyncadd [#allocation6], %s29
      %s31 = sshll.u32 [#allocation5], 4
      %s32 = int_to_ptr.vmem [resolvable:$true] %s31
      %37 = dma.hbm_to_vmem [thread:$0]  %s2, 128, %s32, [#allocation6], 64, 64, 4
    $region13: #{tpu_custom_call.1} parent=1 // pred_fallthru
      _
    // Predicated region
    $region14: #{tpu_custom_call.1} parent=1 // pred_check
      _
    $region15: #{tpu_custom_call.1} parent=1 // pred_check_branch
      %39 = sbr.rel (0) target = $region17
    $region16: #{tpu_custom_call.1} parent=1 // pred_region
      _
    $region17: #{tpu_custom_call.1} parent=1 // pred_fallthru
      _
    // Predicated region
    $region18: #{tpu_custom_call.1} parent=1 // pred_check
      _
    $region19: #{tpu_custom_call.1} parent=1 // pred_check_branch
      %41 = sbr.rel (0) target = $region21
    $region20: #{tpu_custom_call.1} parent=1 // pred_region
      %42 = dma.done [#allocation3], 256
    $region21: #{tpu_custom_call.1} parent=1 // pred_fallthru
      _
    // Predicated region
    $region22: #{tpu_custom_call.1} parent=1 // pred_check
      _
    $region23: #{tpu_custom_call.1} parent=1 // pred_check_branch
      %44 = sbr.rel (0) target = $region25
    $region24: #{tpu_custom_call.1} parent=1 // pred_region
      %45 = dma.done [#allocation6], 128
    $region25: #{tpu_custom_call.1} parent=1 // pred_fallthru
      _
    %v47 = vld [vmem:[#allocation2] sm:$0xff]
    %v48 = vld [vmem:[#allocation2 + $0x8] sm:$0xff]
    %v49 = vpack.c.bf16 %v48, %v47
    %v50 = vld [vmem:[#allocation5] sm:$0xf]
    %v51 = vld [vmem:[#allocation5 + $0x4] sm:$0xf]
    %v54 = vunpack.c.l.b16 %v50
    %v55 = vunpack.c.l.b16 %v51
    %v56 = vpack.c.b16 %v55, %v54
    %vm58 = vcmask 130048
    %v60 = vsel %vm58, %v49, 0
    %62 = vmatprep.subr.bf16.mxu0 0
    %63 = vmatpush1.bf16.msra.mxu0 %v56
    %64 = vmatprep.subr.bf16.mxu0 0
    %65 = vmatpush1.bf16.msra.mxu0 0
    %66 = vmatprep.subr.bf16.mxu0 0
    %67 = vmatpush1.bf16.msra.mxu0 0
    %68 = vmatprep.subr.bf16.mxu0 0
    %69 = vmatpush1.bf16.msra.mxu0 0
    %70 = vmatprep.subr.bf16.mxu0 0
    %71 = vmatpush1.bf16.msra.mxu0 0
    %72 = vmatprep.subr.bf16.mxu0 0
    %73 = vmatpush1.bf16.msra.mxu0 0
    %74 = vmatprep.subr.bf16.mxu0 0
    %75 = vmatpush1.bf16.msra.mxu0 0
    %76 = vmatprep.subr.bf16.mxu0 0
    %77 = vmatpush1.bf16.msra.mxu0 0
    %78 = vmatprep.subr.bf16.mxu0 0
    %79 = vmatpush1.bf16.msra.mxu0 0
    %80 = vmatprep.subr.bf16.mxu0 0
    %81 = vmatpush1.bf16.msra.mxu0 0
    %82 = vmatprep.subr.bf16.mxu0 0
    %83 = vmatpush1.bf16.msra.mxu0 0
    %84 = vmatprep.subr.bf16.mxu0 0
    %85 = vmatpush1.bf16.msra.mxu0 0
    %86 = vmatprep.subr.bf16.mxu0 0
    %87 = vmatpush1.bf16.msra.mxu0 0
    %88 = vmatprep.subr.bf16.mxu0 0
    %89 = vmatpush1.bf16.msra.mxu0 0
    %90 = vmatprep.subr.bf16.mxu0 0
    %91 = vmatpush1.bf16.msra.mxu0 0
    %92 = vmatprep.subr.bf16.mxu0 0
    %93 = vmatpush1.bf16.msra.mxu0 0
    %94 = vmatprep.mubr.bf16.mxu0 0
    %95 = vmatmul.mubr.bf16.gmra.mrb[0].mxu0 %v60
    %v96 = vpop.f32.mrb[0].mxu0
    %v97 = vadd.f32 0.0, %v96
    %v98 = vpop.f32.mrb[0].mxu0
    %v99 = vpop.f32.mrb[0].mxu0
    %v100 = vadd.f32 0.0, %v99
    %v101 = vpop.f32.mrb[0].mxu0
    %102 = vdwg.mxu0
    %v103 = vld [vmem:[%s1] sm:$0x3]
    %v106 = vunpack.c.l.s4 1966171168
    %v107 = vunpack.c.0.s8 %v106
    %v108 = vlaneseq
    %v109 = vshrl.u32 %v108, 7
    %v110 = vsub.s32 %v107, %v109
    %v111 = vrot.slane %v103, %v110
    %v112 = vcombine.high %v111, %v111
    %v114 = vunpack.c.l.s4 1966171168
    %v115 = vunpack.c.0.s8 %v114
    %v116 = vlaneseq
    %v117 = vshrl.u32 %v116, 7
    %v118 = vsub.s32 %v115, %v117
    %v119 = vrot.slane %v111, %v118
    %v121 = vunpack.c.l.s4 1966171168
    %v122 = vunpack.c.0.s8 %v121
    %v123 = vlaneseq
    %v124 = vshrl.u32 %v123, 7
    %v125 = vsub.s32 %v122, %v124
    %v126 = vrot.slane %v112, %v125
    %v127 = vlaneseq
    %v128 = vshrl.u32 %v127, 7
    %v129 = vsub.s32 0, %v128
    %v130 = vrot.slane %v119, %v129
    %v131 = vlaneseq
    %v132 = vshrl.u32 %v131, 7
    %v133 = vsub.s32 0, %v132
    %v134 = vrot.slane %v126, %v133
    %v137 = vadd.f32 %v97, %v130
    %v138 = vadd.f32 %v100, %v134
    %v139 = vmax.f32 %v137, 0.0
    %v140 = vmax.f32 %v138, 0.0
    %v141 = vld [vmem:[%s3] sm:$0x1]
    %v143 = vlaneseq
    %v144 = vshrl.u32 %v143, 7
    %v145 = vsub.s32 0, %v144
    %v146 = vrot.slane %v141, %v145
    %v148 = vmul.f32 %v139, %v146
    %v149 = vmul.f32 %v140, %v146
    %vm150 = vcmask 261120
    %v151 = vsel %vm150, %v148, 0.0
    %152 = vadd.xlane.f32.xlu0 %v151
    %v153 = vpop.xlane.xlu0 %152
    %v154 = vsel %vm150, %v149, 0.0
    %155 = vadd.xlane.f32.xlu0 %v154
    %v156 = vpop.xlane.xlu0 %155
    %v159 = vlaneseq
    %v160 = vand.u32 %v159, 127
    %v161 = vlaneseq
    %v162 = vshrl.u32 %v161, 7
    %v163 = vsub.s32 %v160, %v162
    %v164 = vrot.slane %v153, %v163
    %v165 = vlaneseq
    %v166 = vshrl.u32 %v165, 7
    %v167 = vsub.s32 %v160, %v166
    %v168 = vrot.slane %v156, %v167
    %vm169 = vcmask 1041409
    %v170 = vsel %vm169, %v168, %v164
    %vm172 = vcmask 58368
    %v173 = vsel %vm172, %v170, -inf
    %174 = vmax.xlane.f32.xlu0 %v173
    %v175 = vpop.xlane.xlu0 %174
    %v177 = vlaneseq
    %v178 = vshrl.u32 %v177, 7
    %v179 = vsub.s32 0, %v178
    %v180 = vrot.slane %v175, %v179
    %v181 = vlaneseq
    %v182 = vshrl.u32 %v181, 7
    %v183 = vsub.s32 1, %v182
    %v184 = vrot.slane %v175, %v183
    %v187 = vsub.f32 %v153, %v180
    %v188 = vsub.f32 %v156, %v184
    %v189 = vmul.f32 %v187, 1.442695
    %v190 = vpow.pop %v189
    %v191 = vmul.f32 %v188, 1.442695
    %v192 = vpow.pop %v191
    %195 = vset.pattern.permute.xlu0 0
    %196 = vperm.xlu0 %195, %v190
    %v197 = vpop.permute.xlu0 %196
    %198 = vset.pattern.permute.xlu0 0
    %199 = vperm.xlu0 %198, %v192
    %v200 = vpop.permute.xlu0 %199
    %v201 = vlaneseq
    %v202 = vshrl.u32 %v201, 7
    %v203 = vsub.s32 %v160, %v202
    %v204 = vrot.slane %v197, %v203
    %v205 = vlaneseq
    %v206 = vshrl.u32 %v205, 7
    %v207 = vsub.s32 %v160, %v206
    %v208 = vrot.slane %v200, %v207
    %v209 = vsel %vm169, %v208, %v204
    %v211 = vsel %vm172, %v209, 0.0
    %212 = vadd.xlane.f32.xlu0 %v211
    %v213 = vpop.xlane.xlu0 %212
    %v214 = vrcp.pop %v213
    %v216 = vlaneseq
    %v217 = vshrl.u32 %v216, 7
    %v218 = vsub.s32 0, %v217
    %v219 = vrot.slane %v214, %v218
    %v220 = vlaneseq
    %v221 = vshrl.u32 %v220, 7
    %v222 = vsub.s32 1, %v221
    %v223 = vrot.slane %v214, %v222
    %v226 = vmul.f32 %v190, %v219
    %v227 = vmul.f32 %v192, %v223
    %230 = vset.pattern.permute.xlu0 0
    %231 = vperm.xlu0 %230, %v226
    %v232 = vpop.permute.xlu0 %231
    %233 = vset.pattern.permute.xlu0 0
    %234 = vperm.xlu0 %233, %v227
    %v235 = vpop.permute.xlu0 %234
    %v236 = vlaneseq
    %v237 = vshrl.u32 %v236, 7
    %v238 = vsub.s32 %v160, %v237
    %v239 = vrot.slane %v232, %v238
    %v240 = vlaneseq
    %v241 = vshrl.u32 %v240, 7
    %v242 = vsub.s32 %v160, %v241
    %v243 = vrot.slane %v235, %v242
    %v244 = vsel %vm169, %v243, %v239
    %246 = vst.msk [vmem:[#allocation7] sm:$0x3] %vm172, %v244
    // Predicated region
    $region26: #{tpu_custom_call.1} parent=1 // pred_check
      _
    $region27: #{tpu_custom_call.1} parent=1 // pred_check_branch
      %248 = sbr.rel (0) target = $region29
    $region28: #{tpu_custom_call.1} parent=1 // pred_region
      %s250 = ssub.s32 32, 32
      %251 = vsyncadd [#allocation4], %s250
      %s253 = sshll.u32 [#allocation7], 4
      %s254 = int_to_ptr.vmem [resolvable:$true] %s253
      %256 = dma.vmem_to_hbm [thread:$0]  %s254, 32, %s4, [#allocation4]
    $region29: #{tpu_custom_call.1} parent=1 // pred_fallthru
      _
    // Predicated region
    $region30: #{tpu_custom_call.1} parent=1 // pred_check
      _
    $region31: #{tpu_custom_call.1} parent=1 // pred_check_branch
      %258 = sbr.rel (0) target = $region33
    $region32: #{tpu_custom_call.1} parent=1 // pred_region
      %259 = dma.done [#allocation4], 32
    $region33: #{tpu_custom_call.1} parent=1 // pred_fallthru
      _
    %260 = vsyncpa [#allocation3], 1
    %261 = vsyncpa [#allocation6], 1
    %262 = vsyncpa [#allocation4], 1

</llo_original>
